<compile_context>
chip_gen: v5e
topology: v5e:2x2
jax: 0.10.0
libtpu: 0.0.40
codegen_flags: <defaults>
</compile_context>

<pallas_src>
import functools

import jax
import jax.numpy as jnp
from jax import lax
from jax.experimental import pallas as pl
from jax.experimental.pallas import tpu as pltpu


_MXU_MIN_CIN = 32  # below this K an MXU pass is mostly wasted; use VPU MACs instead


def _xception_kernel(x_ref, w1_ref, b1_ref, w2_ref, b2_ref, m_ref, o_ref, *, W):
    """Fused 1x1 pointwise conv + 3x3 depthwise conv (stride 1, pad 1).

    x_ref  : (1, Cin, Sp)  Sp = H*W padded to a multiple of 128, lane-dense
    w1_ref : (Cb, Cin)     pointwise weight rows for this Cout tile
    b1_ref : (Cb, 1)       pointwise bias
    w2_ref : (Cb, 9)       3x3 depthwise taps, row-major (kh*3 + kw)
    b2_ref : (Cb, 1)       depthwise bias
    m_ref  : (8, Sp)       precomputed {0,1} boundary masks, one row per non-center tap
    o_ref  : (1, Cb, Sp)
    """
    Cin = x_ref.shape[1]
    Sp = x_ref.shape[2]

    b1 = b1_ref[...].astype(jnp.float32)
    w2 = w2_ref[...].astype(jnp.float32)
    b2 = b2_ref[...].astype(jnp.float32)

    # ---- 1x1 pointwise conv ----
    if Cin >= _MXU_MIN_CIN:
        # Route the bulk of the FLOPs through the MXU with f32 accumulation.
        y = jnp.dot(w1_ref[...], x_ref[0],
                    preferred_element_type=jnp.float32) + b1
    else:
        # Tiny K: a few VPU outer-product MACs beat an MXU pass (demo shape path).
        x = x_ref[0].astype(jnp.float32)
        w1 = w1_ref[...].astype(jnp.float32)
        y = w1[:, 0:1] * x[0:1, :] + b1
        for ci in range(1, Cin):
            y = y + w1[:, ci:ci + 1] * x[ci:ci + 1, :]

    # ---- 3x3 depthwise conv, stride=1, padding=1 ----
    # Lane rolls (XLU) + precomputed float masks: one vmul per tap replaces the
    # old iota / div / mod / logical_and / select chain on the VALU.
    acc = w2[:, 4:5] * y + b2                      # center tap + bias
    t = 0
    for kh in range(3):
        for kw in range(3):
            if kh == 1 and kw == 1:
                continue
            off = (kh - 1) * W + (kw - 1)          # flat lane offset to read
            shifted = pltpu.roll(y, (-off) % Sp, 1)
            acc = acc + w2[:, kh * 3 + kw:kh * 3 + kw + 1] * (
                shifted * m_ref[t:t + 1, :])
            t += 1

    o_ref[0] = acc.astype(o_ref.dtype)


def _round_up(x, m):
    return (x + m - 1) // m * m


def _pick_cout_tile(cout):
    """Largest halo-free Cout tile (multiple of 8, <=128) that divides Cout."""
    for cb in (128, 64, 32, 16, 8):
        if cout % cb == 0:
            return cb
    return cout  # non-multiple-of-8 Cout: sublane-padded layout (perf only)


def _build_tap_masks(H, W, s_pad, dtype):
    """(8, s_pad) {0,1} masks: row t == 1 where the t-th non-center 3x3 tap is in-bounds."""
    lane = jnp.arange(s_pad, dtype=jnp.int32)
    h_idx = lane // W
    w_idx = lane % W
    true = jnp.ones((s_pad,), dtype=bool)
    h_ok = {0: h_idx >= 1, 1: true, 2: h_idx < H - 1}
    w_ok = {0: w_idx >= 1, 1: true, 2: w_idx < W - 1}
    rows = []
    for kh in range(3):
        for kw in range(3):
            if kh == 1 and kw == 1:
                continue
            rows.append(jnp.logical_and(h_ok[kh], w_ok[kw]))
    return jnp.stack(rows).astype(dtype)


def xception_forward(x_nchw, w1, b1, w2, b2, *, stream_dtype=jnp.float32):
    """x_nchw: (N, Cin, H, W); w1: (Cout, Cin, 1, 1); b1: (Cout,);
    w2: (Cout, 1, 3, 3) depthwise; b2: (Cout,). Returns (N, Cout, H, W) float32.

    stream_dtype controls the HBM/streaming dtype of x and w1 (use jnp.bfloat16 on
    v6e/v7x to halve HBM traffic); accumulation is always float32.
    """
    N, Cin, H, W = x_nchw.shape
    Cout = w1.shape[0]
    S = H * W
    S_pad = _round_up(S, 128)
    f32 = jnp.float32

    # Free contiguous reshapes only (no HBM transpose); pad flattened spatial so the
    # output store slab is 128-lane dense.
    x_k = x_nchw.reshape(N, Cin, S).astype(stream_dtype)
    if S_pad != S:
        x_k = jnp.pad(x_k, ((0, 0), (0, 0), (0, S_pad - S)))
    w1_k = w1.reshape(Cout, Cin).astype(stream_dtype)
    b1_k = b1.reshape(Cout, 1).astype(f32)
    w2_k = w2.reshape(Cout, 9).astype(f32)
    b2_k = b2.reshape(Cout, 1).astype(f32)
    masks = _build_tap_masks(H, W, S_pad, f32)

    Cb = _pick_cout_tile(Cout)
    kernel = functools.partial(_xception_kernel, W=W)

    out = pl.pallas_call(
        kernel,
        out_shape=jax.ShapeDtypeStruct((N, Cout, S_pad), f32),
        grid_spec=pltpu.PrefetchScalarGridSpec(
            num_scalar_prefetch=0,
            grid=(N, Cout // Cb),
            in_specs=[
                pl.BlockSpec((1, Cin, S_pad), lambda n, c: (n, 0, 0)),
                pl.BlockSpec((Cb, Cin), lambda n, c: (c, 0)),
                pl.BlockSpec((Cb, 1), lambda n, c: (c, 0)),
                pl.BlockSpec((Cb, 9), lambda n, c: (c, 0)),
                pl.BlockSpec((Cb, 1), lambda n, c: (c, 0)),
                pl.BlockSpec((8, S_pad), lambda n, c: (0, 0)),  # masks, fetched once
            ],
            out_specs=pl.BlockSpec((1, Cb, S_pad), lambda n, c: (n, c, 0)),
        ),
        compiler_params=pltpu.CompilerParams(
            dimension_semantics=("parallel", "parallel"),
            # 48 MiB: headroom under v7x's 64 MiB physical VMEM, well under v5e/v6e.
            vmem_limit_bytes=48 * 1024 * 1024,
        ),
    )(x_k, w1_k, b1_k, w2_k, b2_k, masks)

    return out[:, :, :S].reshape(N, Cout, H, W)


def _reference_forward(x_nchw, w1, b1, w2, b2):
    """Pure-JAX NCHW reference matching torch.nn.Conv2d semantics."""
    Cout = w1.shape[0]
    y = lax.conv_general_dilated(
        x_nchw, w1, window_strides=(1, 1), padding="VALID",
        dimension_numbers=("NCHW", "OIHW", "NCHW"))
    y = y + b1.reshape(1, Cout, 1, 1)
    z = lax.conv_general_dilated(
        y, w2, window_strides=(1, 1), padding=((1, 1), (1, 1)),
        dimension_numbers=("NCHW", "OIHW", "NCHW"),
        feature_group_count=Cout)
    z = z + b2.reshape(1, Cout, 1, 1)
    return z


if __name__ == "__main__":
    key = jax.random.PRNGKey(0)

    # --- check 1: tiny-Cin VPU pointwise path, S already a multiple of 128 ---
    N, Cin, Cout, H, W = 2, 4, 8, 16, 16
    k_x, k_w1, k_b1, k_w2, k_b2, key = jax.random.split(key, 6)
    x = jax.random.normal(k_x, (N, Cin, H, W), dtype=jnp.float32)
    w1 = 0.1 * jax.random.normal(k_w1, (Cout, Cin, 1, 1), dtype=jnp.float32)
    b1 = 0.1 * jax.random.normal(k_b1, (Cout,), dtype=jnp.float32)
    w2 = 0.1 * jax.random.normal(k_w2, (Cout, 1, 3, 3), dtype=jnp.float32)  # depthwise
    b2 = 0.1 * jax.random.normal(k_b2, (Cout,), dtype=jnp.float32)

    out = jax.block_until_ready(xception_forward(x, w1, b1, w2, b2))
    ref = _reference_forward(x, w1, b1, w2, b2)
    assert out.shape == (N, Cout, H, W)
    assert jnp.allclose(out, ref, atol=1e-4, rtol=1e-4)

    # --- check 2: MXU pointwise path + bf16 streaming + padded spatial (S=63 -> 128) ---
    N2, Cin2, Cout2, H2, W2 = 2, 32, 16, 7, 9
    k_x, k_w1, k_b1, k_w2, k_b2, key = jax.random.split(key, 6)
    x2 = jax.random.normal(k_x, (N2, Cin2, H2, W2), dtype=jnp.float32)
    w1_2 = 0.1 * jax.random.normal(k_w1, (Cout2, Cin2, 1, 1), dtype=jnp.float32)
    b1_2 = 0.1 * jax.random.normal(k_b1, (Cout2,), dtype=jnp.float32)
    w2_2 = 0.1 * jax.random.normal(k_w2, (Cout2, 1, 3, 3), dtype=jnp.float32)
    b2_2 = 0.1 * jax.random.normal(k_b2, (Cout2,), dtype=jnp.float32)

    out2 = jax.block_until_ready(
        xception_forward(x2, w1_2, b1_2, w2_2, b2_2, stream_dtype=jnp.bfloat16))
    ref2 = _reference_forward(x2, w1_2, b1_2, w2_2, b2_2)
    assert out2.shape == (N2, Cout2, H2, W2)
    # bf16-streamed inputs with f32 MXU accumulation: looser tolerance than the f32 check.
    assert jnp.allclose(out2, ref2, atol=5e-2, rtol=5e-2)

    print("KERNEL_OK")
</pallas_src>

<mosaic_0001>
module attributes {stable_mosaic.version = 11 : i64} {
  func.func @_xception_kernel(%arg0: i32, %arg1: i32, %arg2: memref<1x4x256xf32, #tpu.memory_space<vmem>>, %arg3: memref<8x4xf32, #tpu.memory_space<vmem>>, %arg4: memref<8x1xf32, #tpu.memory_space<vmem>>, %arg5: memref<8x9xf32, #tpu.memory_space<vmem>>, %arg6: memref<8x1xf32, #tpu.memory_space<vmem>>, %arg7: memref<8x256xf32, #tpu.memory_space<vmem>>, %arg8: memref<1x8x256xf32, #tpu.memory_space<vmem>>) attributes {dimension_semantics = [#tpu.dimension_semantics<parallel>, #tpu.dimension_semantics<parallel>], iteration_bounds = array<i64: 2, 1>, scalar_prefetch = 0 : i64, scratch_operands = 0 : i64, tpu.core_type = #tpu.core_type<tc>, window_params = [{transform_indices = @transform_0, window_bounds = array<i64: 1, 4, 256>}, {transform_indices = @transform_1, window_bounds = array<i64: 8, 4>}, {transform_indices = @transform_2, window_bounds = array<i64: 8, 1>}, {transform_indices = @transform_3, window_bounds = array<i64: 8, 9>}, {transform_indices = @transform_4, window_bounds = array<i64: 8, 1>}, {pipeline_mode = #tpu.pipeline_mode<synchronous>, transform_indices = @transform_5, window_bounds = array<i64: 8, 256>}, {transform_indices = @transform_6, window_bounds = array<i64: 1, 8, 256>}]} {
    %c0 = arith.constant 0 : index
    %c0_0 = arith.constant 0 : index
    %0 = vector.load %arg4[%c0, %c0_0] : memref<8x1xf32, #tpu.memory_space<vmem>>, vector<8x1xf32>
    %c0_1 = arith.constant 0 : index
    %c0_2 = arith.constant 0 : index
    %1 = vector.load %arg5[%c0_1, %c0_2] : memref<8x9xf32, #tpu.memory_space<vmem>>, vector<8x9xf32>
    %c0_3 = arith.constant 0 : index
    %c0_4 = arith.constant 0 : index
    %2 = vector.load %arg6[%c0_3, %c0_4] : memref<8x1xf32, #tpu.memory_space<vmem>>, vector<8x1xf32>
    %c0_5 = arith.constant 0 : index
    %c0_6 = arith.constant 0 : index
    %c0_7 = arith.constant 0 : index
    %3 = vector.load %arg2[%c0_5, %c0_6, %c0_7] : memref<1x4x256xf32, #tpu.memory_space<vmem>>, vector<1x4x256xf32>
    %4 = vector.shape_cast %3 : vector<1x4x256xf32> to vector<4x256xf32>
    %c0_8 = arith.constant 0 : index
    %c0_9 = arith.constant 0 : index
    %5 = vector.load %arg3[%c0_8, %c0_9] : memref<8x4xf32, #tpu.memory_space<vmem>>, vector<8x4xf32>
    %6 = vector.extract_strided_slice %5 {offsets = [0, 0], sizes = [8, 1], strides = [1, 1]} : vector<8x4xf32> to vector<8x1xf32>
    %7 = vector.extract_strided_slice %4 {offsets = [0, 0], sizes = [1, 256], strides = [1, 1]} : vector<4x256xf32> to vector<1x256xf32>
    %8 = vector.broadcast %6 : vector<8x1xf32> to vector<8x256xf32>
    %9 = vector.broadcast %7 : vector<1x256xf32> to vector<8x256xf32>
    %10 = arith.mulf %8, %9 : vector<8x256xf32>
    %11 = vector.broadcast %0 : vector<8x1xf32> to vector<8x256xf32>
    %12 = arith.addf %10, %11 : vector<8x256xf32>
    %13 = vector.extract_strided_slice %5 {offsets = [0, 1], sizes = [8, 1], strides = [1, 1]} : vector<8x4xf32> to vector<8x1xf32>
    %14 = vector.extract_strided_slice %4 {offsets = [1, 0], sizes = [1, 256], strides = [1, 1]} : vector<4x256xf32> to vector<1x256xf32>
    %15 = vector.broadcast %13 : vector<8x1xf32> to vector<8x256xf32>
    %16 = vector.broadcast %14 : vector<1x256xf32> to vector<8x256xf32>
    %17 = arith.mulf %15, %16 : vector<8x256xf32>
    %18 = arith.addf %12, %17 : vector<8x256xf32>
    %19 = vector.extract_strided_slice %5 {offsets = [0, 2], sizes = [8, 1], strides = [1, 1]} : vector<8x4xf32> to vector<8x1xf32>
    %20 = vector.extract_strided_slice %4 {offsets = [2, 0], sizes = [1, 256], strides = [1, 1]} : vector<4x256xf32> to vector<1x256xf32>
    %21 = vector.broadcast %19 : vector<8x1xf32> to vector<8x256xf32>
    %22 = vector.broadcast %20 : vector<1x256xf32> to vector<8x256xf32>
    %23 = arith.mulf %21, %22 : vector<8x256xf32>
    %24 = arith.addf %18, %23 : vector<8x256xf32>
    %25 = vector.extract_strided_slice %5 {offsets = [0, 3], sizes = [8, 1], strides = [1, 1]} : vector<8x4xf32> to vector<8x1xf32>
    %26 = vector.extract_strided_slice %4 {offsets = [3, 0], sizes = [1, 256], strides = [1, 1]} : vector<4x256xf32> to vector<1x256xf32>
    %27 = vector.broadcast %25 : vector<8x1xf32> to vector<8x256xf32>
    %28 = vector.broadcast %26 : vector<1x256xf32> to vector<8x256xf32>
    %29 = arith.mulf %27, %28 : vector<8x256xf32>
    %30 = arith.addf %24, %29 : vector<8x256xf32>
    %31 = vector.extract_strided_slice %1 {offsets = [0, 4], sizes = [8, 1], strides = [1, 1]} : vector<8x9xf32> to vector<8x1xf32>
    %32 = vector.broadcast %31 : vector<8x1xf32> to vector<8x256xf32>
    %33 = arith.mulf %32, %30 : vector<8x256xf32>
    %34 = vector.broadcast %2 : vector<8x1xf32> to vector<8x256xf32>
    %35 = arith.addf %33, %34 : vector<8x256xf32>
    %c17_i32 = arith.constant 17 : i32
    %36 = tpu.dynamic_rotate %30 by %c17_i32 dim 1 : vector<8x256xf32>, i32 -> vector<8x256xf32>
    %37 = vector.extract_strided_slice %1 {offsets = [0, 0], sizes = [8, 1], strides = [1, 1]} : vector<8x9xf32> to vector<8x1xf32>
    %c0_10 = arith.constant 0 : index
    %c0_11 = arith.constant 0 : index
    %38 = vector.load %arg7[%c0_10, %c0_11] : memref<8x256xf32, #tpu.memory_space<vmem>>, vector<1x256xf32>
    %39 = vector.broadcast %38 : vector<1x256xf32> to vector<8x256xf32>
    %40 = arith.mulf %36, %39 : vector<8x256xf32>
    %41 = vector.broadcast %37 : vector<8x1xf32> to vector<8x256xf32>
    %42 = arith.mulf %41, %40 : vector<8x256xf32>
    %43 = arith.addf %35, %42 : vector<8x256xf32>
    %c16_i32 = arith.constant 16 : i32
    %44 = tpu.dynamic_rotate %30 by %c16_i32 dim 1 : vector<8x256xf32>, i32 -> vector<8x256xf32>
    %45 = vector.extract_strided_slice %1 {offsets = [0, 1], sizes = [8, 1], strides = [1, 1]} : vector<8x9xf32> to vector<8x1xf32>
    %c1 = arith.constant 1 : index
    %c0_12 = arith.constant 0 : index
    %46 = vector.load %arg7[%c1, %c0_12] : memref<8x256xf32, #tpu.memory_space<vmem>>, vector<1x256xf32>
    %47 = vector.broadcast %46 : vector<1x256xf32> to vector<8x256xf32>
    %48 = arith.mulf %44, %47 : vector<8x256xf32>
    %49 = vector.broadcast %45 : vector<8x1xf32> to vector<8x256xf32>
    %50 = arith.mulf %49, %48 : vector<8x256xf32>
    %51 = arith.addf %43, %50 : vector<8x256xf32>
    %c15_i32 = arith.constant 15 : i32
    %52 = tpu.dynamic_rotate %30 by %c15_i32 dim 1 : vector<8x256xf32>, i32 -> vector<8x256xf32>
    %53 = vector.extract_strided_slice %1 {offsets = [0, 2], sizes = [8, 1], strides = [1, 1]} : vector<8x9xf32> to vector<8x1xf32>
    %c2 = arith.constant 2 : index
    %c0_13 = arith.constant 0 : index
    %54 = vector.load %arg7[%c2, %c0_13] : memref<8x256xf32, #tpu.memory_space<vmem>>, vector<1x256xf32>
    %55 = vector.broadcast %54 : vector<1x256xf32> to vector<8x256xf32>
    %56 = arith.mulf %52, %55 : vector<8x256xf32>
    %57 = vector.broadcast %53 : vector<8x1xf32> to vector<8x256xf32>
    %58 = arith.mulf %57, %56 : vector<8x256xf32>
    %59 = arith.addf %51, %58 : vector<8x256xf32>
    %c1_i32 = arith.constant 1 : i32
    %60 = tpu.dynamic_rotate %30 by %c1_i32 dim 1 : vector<8x256xf32>, i32 -> vector<8x256xf32>
    %61 = vector.extract_strided_slice %1 {offsets = [0, 3], sizes = [8, 1], strides = [1, 1]} : vector<8x9xf32> to vector<8x1xf32>
    %c3 = arith.constant 3 : index
    %c0_14 = arith.constant 0 : index
    %62 = vector.load %arg7[%c3, %c0_14] : memref<8x256xf32, #tpu.memory_space<vmem>>, vector<1x256xf32>
    %63 = vector.broadcast %62 : vector<1x256xf32> to vector<8x256xf32>
    %64 = arith.mulf %60, %63 : vector<8x256xf32>
    %65 = vector.broadcast %61 : vector<8x1xf32> to vector<8x256xf32>
    %66 = arith.mulf %65, %64 : vector<8x256xf32>
    %67 = arith.addf %59, %66 : vector<8x256xf32>
    %c255_i32 = arith.constant 255 : i32
    %68 = tpu.dynamic_rotate %30 by %c255_i32 dim 1 : vector<8x256xf32>, i32 -> vector<8x256xf32>
    %69 = vector.extract_strided_slice %1 {offsets = [0, 5], sizes = [8, 1], strides = [1, 1]} : vector<8x9xf32> to vector<8x1xf32>
    %c4 = arith.constant 4 : index
    %c0_15 = arith.constant 0 : index
    %70 = vector.load %arg7[%c4, %c0_15] : memref<8x256xf32, #tpu.memory_space<vmem>>, vector<1x256xf32>
    %71 = vector.broadcast %70 : vector<1x256xf32> to vector<8x256xf32>
    %72 = arith.mulf %68, %71 : vector<8x256xf32>
    %73 = vector.broadcast %69 : vector<8x1xf32> to vector<8x256xf32>
    %74 = arith.mulf %73, %72 : vector<8x256xf32>
    %75 = arith.addf %67, %74 : vector<8x256xf32>
    %c241_i32 = arith.constant 241 : i32
    %76 = tpu.dynamic_rotate %30 by %c241_i32 dim 1 : vector<8x256xf32>, i32 -> vector<8x256xf32>
    %77 = vector.extract_strided_slice %1 {offsets = [0, 6], sizes = [8, 1], strides = [1, 1]} : vector<8x9xf32> to vector<8x1xf32>
    %c5 = arith.constant 5 : index
    %c0_16 = arith.constant 0 : index
    %78 = vector.load %arg7[%c5, %c0_16] : memref<8x256xf32, #tpu.memory_space<vmem>>, vector<1x256xf32>
    %79 = vector.broadcast %78 : vector<1x256xf32> to vector<8x256xf32>
    %80 = arith.mulf %76, %79 : vector<8x256xf32>
    %81 = vector.broadcast %77 : vector<8x1xf32> to vector<8x256xf32>
    %82 = arith.mulf %81, %80 : vector<8x256xf32>
    %83 = arith.addf %75, %82 : vector<8x256xf32>
    %c240_i32 = arith.constant 240 : i32
    %84 = tpu.dynamic_rotate %30 by %c240_i32 dim 1 : vector<8x256xf32>, i32 -> vector<8x256xf32>
    %85 = vector.extract_strided_slice %1 {offsets = [0, 7], sizes = [8, 1], strides = [1, 1]} : vector<8x9xf32> to vector<8x1xf32>
    %c6 = arith.constant 6 : index
    %c0_17 = arith.constant 0 : index
    %86 = vector.load %arg7[%c6, %c0_17] : memref<8x256xf32, #tpu.memory_space<vmem>>, vector<1x256xf32>
    %87 = vector.broadcast %86 : vector<1x256xf32> to vector<8x256xf32>
    %88 = arith.mulf %84, %87 : vector<8x256xf32>
    %89 = vector.broadcast %85 : vector<8x1xf32> to vector<8x256xf32>
    %90 = arith.mulf %89, %88 : vector<8x256xf32>
    %91 = arith.addf %83, %90 : vector<8x256xf32>
    %c239_i32 = arith.constant 239 : i32
    %92 = tpu.dynamic_rotate %30 by %c239_i32 dim 1 : vector<8x256xf32>, i32 -> vector<8x256xf32>
    %93 = vector.extract_strided_slice %1 {offsets = [0, 8], sizes = [8, 1], strides = [1, 1]} : vector<8x9xf32> to vector<8x1xf32>
    %c7 = arith.constant 7 : index
    %c0_18 = arith.constant 0 : index
    %94 = vector.load %arg7[%c7, %c0_18] : memref<8x256xf32, #tpu.memory_space<vmem>>, vector<1x256xf32>
    %95 = vector.broadcast %94 : vector<1x256xf32> to vector<8x256xf32>
    %96 = arith.mulf %92, %95 : vector<8x256xf32>
    %97 = vector.broadcast %93 : vector<8x1xf32> to vector<8x256xf32>
    %98 = arith.mulf %97, %96 : vector<8x256xf32>
    %99 = arith.addf %91, %98 : vector<8x256xf32>
    %c0_19 = arith.constant 0 : index
    %c0_20 = arith.constant 0 : index
    %c0_21 = arith.constant 0 : index
    %100 = vector.load %arg8[%c0_19, %c0_20, %c0_21] : memref<1x8x256xf32, #tpu.memory_space<vmem>>, vector<1x8x256xf32>
    %101 = vector.shape_cast %100 : vector<1x8x256xf32> to vector<8x256xf32>
    %102 = vector.shape_cast %99 : vector<8x256xf32> to vector<1x8x256xf32>
    tpu.vector_store %arg8[%c0_19, %c0_20, %c0_21], %102 {strides = array<i32>} : memref<1x8x256xf32, #tpu.memory_space<vmem>>, vector<1x8x256xf32>,
    return
  }
  func.func @transform_0(%arg0: i32, %arg1: i32) -> (i32, i32, i32) {
    %c0_i32 = arith.constant 0 : i32
    %c0_i32_0 = arith.constant 0 : i32
    %c0_i32_1 = arith.constant 0 : i32
    return %arg0, %c0_i32, %c0_i32_0 : i32, i32, i32
  }
  func.func @transform_1(%arg0: i32, %arg1: i32) -> (i32, i32) {
    %c0_i32 = arith.constant 0 : i32
    %c0_i32_0 = arith.constant 0 : i32
    return %arg1, %c0_i32 : i32, i32
  }
  func.func @transform_2(%arg0: i32, %arg1: i32) -> (i32, i32) {
    %c0_i32 = arith.constant 0 : i32
    %c0_i32_0 = arith.constant 0 : i32
    return %arg1, %c0_i32 : i32, i32
  }
  func.func @transform_3(%arg0: i32, %arg1: i32) -> (i32, i32) {
    %c0_i32 = arith.constant 0 : i32
    %c0_i32_0 = arith.constant 0 : i32
    return %arg1, %c0_i32 : i32, i32
  }
  func.func @transform_4(%arg0: i32, %arg1: i32) -> (i32, i32) {
    %c0_i32 = arith.constant 0 : i32
    %c0_i32_0 = arith.constant 0 : i32
    return %arg1, %c0_i32 : i32, i32
  }
  func.func @transform_5(%arg0: i32, %arg1: i32) -> (i32, i32) {
    %c0_i32 = arith.constant 0 : i32
    %c0_i32_0 = arith.constant 0 : i32
    %c0_i32_1 = arith.constant 0 : i32
    return %c0_i32, %c0_i32_0 : i32, i32
  }
  func.func @transform_6(%arg0: i32, %arg1: i32) -> (i32, i32, i32) {
    %c0_i32 = arith.constant 0 : i32
    %c0_i32_0 = arith.constant 0 : i32
    return %arg0, %arg1, %c0_i32 : i32, i32, i32
  }
}

</mosaic_0001>

<llo_original>
// kernel: tpu_custom_call.1
$region0: #{tpu_custom_call.1}
  #allocation0 [shape = 'u32[]', space=smem, size = 0x4, offset = 0x4, fixed_abs, tag = 'smem constant byte address 0x4 - core index']
  #allocation1 [shape = 'u32[72,128]{1,0:T(1,128)}', space=vmem, size = 0x9000, scoped, tag = 'internal scratch']
  %s0 = inlined_call_operand.vmem [shape: f32[2,4,256], index: 0, kind: input, shape index: {}]
  %s1 = inlined_call_operand.vmem [shape: f32[8,4], index: 1, kind: input, shape index: {}]
  %s2 = inlined_call_operand.vmem [shape: f32[8,1], index: 2, kind: input, shape index: {}]
  %s3 = inlined_call_operand.vmem [shape: f32[8,9], index: 3, kind: input, shape index: {}]
  %s4 = inlined_call_operand.vmem [shape: f32[8,1], index: 4, kind: input, shape index: {}]
  %s5 = inlined_call_operand.hbm [shape: f32[8,256], index: 5, kind: input, shape index: {}]
  %s6 = inlined_call_operand.hbm [shape: f32[2,8,256], index: 6, kind: output, shape index: {}]
  %s7 = sld [smem:[#allocation0]]
  $region61: #{tpu_custom_call.1} parent=0
    _
  %s9 = ssub.s32 1, %s7
  %s10 = scalar_select 0, %s9, %s7
  $region1: #{tpu_custom_call.1} parent=0
    #allocation2 [shape = 'u8[8192]{0}', space=vmem, size = 0x2000, scoped, tag = 'input window, operand 5, single buffered']
    #allocation3 [shape = 's32[2]{0}', space=sflag, size = 0x8, scoped, tag = 'scoped memory for tpu_custom_call.1']
    #allocation4 [shape = 's32[2]{0}', space=sflag, size = 0x8, scoped, tag = 'scoped memory for tpu_custom_call.1']
    #allocation5 [shape = 'u8[16384]{0}', space=vmem, size = 0x4000, scoped, tag = 'output window, operand 0']
    %11 = vsyncpa [#allocation3], 0
    %12 = vsyncpa [#allocation4], 0
    %s13 = scalar_lea.sflag [#allocation4], 1
    %14 = vsyncpa %s13, 0
    loop: start=0, step=1, limit=4
    $region2: #{tpu_custom_call.1} parent=1 // loop_pre_header
      _
    $region3: #{tpu_custom_call.1} parent=1 // loop_header
      %s16 = sphi 0, %s20
      %p17 = scmp.ge.s32.totalorder %s16, 4
      %s23 = sphi 0, %s35
      %s24 = sphi 0, %s31
      %s25 = sphi 0, %s23
      %s26 = sphi 0, %s24
      %s27 = sphi 0, %s25
      %s28 = sphi 0, %s26
      %s38 = sphi 0, %s40
      %s41 = sphi 0, %s38
      %s42 = sphi 0, %s41
      %s58 = sphi 0, %s42
      %s64 = sphi 0, %s66
      %s67 = sphi 0, %s64
      %s68 = sphi 0, %s67
      %s84 = sphi 0, %s68
      %s90 = sphi 0, %s92
      %s93 = sphi 0, %s90
      %s94 = sphi 0, %s93
      %s110 = sphi 0, %s94
      %s116 = sphi 0, %s118
      %s119 = sphi 0, %s116
      %s120 = sphi 0, %s119
      %s136 = sphi 0, %s120
      %s142 = sphi 0, %s144
      %s145 = sphi 0, %s142
      %s146 = sphi 0, %s145
      %s162 = sphi 0, %s146
      %s166 = sphi 0, %s166
      %s168 = sphi 0, %s166
      %s169 = sphi 0, %s168
      %s183 = sphi 0, %s169
      %s191 = sphi 0, %s193
      %s194 = sphi 0, %s191
      %s195 = sphi 0, %s194
      %s211 = sphi 0, %s195
    $region4: #{tpu_custom_call.1} parent=1 // loop_header_branch
      %19 = sbr.rel (%p17) target = $region8
    $region5: #{tpu_custom_call.1} parent=1 // loop_body
      %s21 = ssub.s32 %s16, 1
      %s22 = ssub.s32 %s16, 2
      %s29 = sadd.s32 1, %s24
      %p30 = scmp.ge.s32.totalorder %s29, 1
      %s31 = scalar_select %p30, 0, %s29
      %s32 = sadd.s32 1, %s23
      %s33 = scalar_select %p30, %s32, %s23
      %p34 = scmp.ge.s32.totalorder %s33, 2
      %s35 = scalar_select %p34, 0, %s33
      %s36 = ssub.s32 %s23, %s35
      %p37 = scmp.eq.s32.totalorder %s36, 0
      %s39 = sadd.s32 %s38, 1
      %s40 = scalar_select %p37, %s38, %s39
      %p43 = pneg %p37
      %p44 = scmp.eq.s32.totalorder %s16, 1
      %p45 = por %p43, %p44
      %p46 = scmp.ne.s32.totalorder %s38, %s41
      %p47 = scmp.eq.s32.totalorder %s16, 0
      %p48 = por %p46, %p47
      %p49 = scmp.ne.s32.totalorder %s38, %s41
      %p50 = scmp.eq.s32.totalorder %s21, 1
      %p51 = por %p49, %p50
      %p52 = scmp.ne.s32.totalorder %s41, %s42
      %p53 = scmp.eq.s32.totalorder %s21, 0
      %p54 = por %p52, %p53
      %p55 = scmp.ne.s32.totalorder %s41, %s42
      %p56 = scmp.eq.s32.totalorder %s22, 1
      %p57 = por %p55, %p56
      %p59 = scmp.ne.s32.totalorder %s42, %s58
      %p60 = scmp.eq.s32.totalorder %s22, 0
      %p61 = por %p59, %p60
      %s62 = ssub.s32 %s24, %s31
      %p63 = scmp.eq.s32.totalorder %s62, 0
      %s65 = sadd.s32 %s64, 1
      %s66 = scalar_select %p63, %s64, %s65
      %p69 = pneg %p63
      %p70 = scmp.eq.s32.totalorder %s16, 1
      %p71 = por %p69, %p70
      %p72 = scmp.ne.s32.totalorder %s64, %s67
      %p73 = scmp.eq.s32.totalorder %s16, 0
      %p74 = por %p72, %p73
      %p75 = scmp.ne.s32.totalorder %s64, %s67
      %p76 = scmp.eq.s32.totalorder %s21, 1
      %p77 = por %p75, %p76
      %p78 = scmp.ne.s32.totalorder %s67, %s68
      %p79 = scmp.eq.s32.totalorder %s21, 0
      %p80 = por %p78, %p79
      %p81 = scmp.ne.s32.totalorder %s67, %s68
      %p82 = scmp.eq.s32.totalorder %s22, 1
      %p83 = por %p81, %p82
      %p85 = scmp.ne.s32.totalorder %s68, %s84
      %p86 = scmp.eq.s32.totalorder %s22, 0
      %p87 = por %p85, %p86
      %s88 = ssub.s32 %s24, %s31
      %p89 = scmp.eq.s32.totalorder %s88, 0
      %s91 = sadd.s32 %s90, 1
      %s92 = scalar_select %p89, %s90, %s91
      %p95 = pneg %p89
      %p96 = scmp.eq.s32.totalorder %s16, 1
      %p97 = por %p95, %p96
      %p98 = scmp.ne.s32.totalorder %s90, %s93
      %p99 = scmp.eq.s32.totalorder %s16, 0
      %p100 = por %p98, %p99
      %p101 = scmp.ne.s32.totalorder %s90, %s93
      %p102 = scmp.eq.s32.totalorder %s21, 1
      %p103 = por %p101, %p102
      %p104 = scmp.ne.s32.totalorder %s93, %s94
      %p105 = scmp.eq.s32.totalorder %s21, 0
      %p106 = por %p104, %p105
      %p107 = scmp.ne.s32.totalorder %s93, %s94
      %p108 = scmp.eq.s32.totalorder %s22, 1
      %p109 = por %p107, %p108
      %p111 = scmp.ne.s32.totalorder %s94, %s110
      %p112 = scmp.eq.s32.totalorder %s22, 0
      %p113 = por %p111, %p112
      %s114 = ssub.s32 %s24, %s31
      %p115 = scmp.eq.s32.totalorder %s114, 0
      %s117 = sadd.s32 %s116, 1
      %s118 = scalar_select %p115, %s116, %s117
      %p121 = pneg %p115
      %p122 = scmp.eq.s32.totalorder %s16, 1
      %p123 = por %p121, %p122
      %p124 = scmp.ne.s32.totalorder %s116, %s119
      %p125 = scmp.eq.s32.totalorder %s16, 0
      %p126 = por %p124, %p125
      %p127 = scmp.ne.s32.totalorder %s116, %s119
      %p128 = scmp.eq.s32.totalorder %s21, 1
      %p129 = por %p127, %p128
      %p130 = scmp.ne.s32.totalorder %s119, %s120
      %p131 = scmp.eq.s32.totalorder %s21, 0
      %p132 = por %p130, %p131
      %p133 = scmp.ne.s32.totalorder %s119, %s120
      %p134 = scmp.eq.s32.totalorder %s22, 1
      %p135 = por %p133, %p134
      %p137 = scmp.ne.s32.totalorder %s120, %s136
      %p138 = scmp.eq.s32.totalorder %s22, 0
      %p139 = por %p137, %p138
      %s140 = ssub.s32 %s24, %s31
      %p141 = scmp.eq.s32.totalorder %s140, 0
      %s143 = sadd.s32 %s142, 1
      %s144 = scalar_select %p141, %s142, %s143
      %p147 = pneg %p141
      %p148 = scmp.eq.s32.totalorder %s16, 1
      %p149 = por %p147, %p148
      %p150 = scmp.ne.s32.totalorder %s142, %s145
      %p151 = scmp.eq.s32.totalorder %s16, 0
      %p152 = por %p150, %p151
      %p153 = scmp.ne.s32.totalorder %s142, %s145
      %p154 = scmp.eq.s32.totalorder %s21, 1
      %p155 = por %p153, %p154
      %p156 = scmp.ne.s32.totalorder %s145, %s146
      %p157 = scmp.eq.s32.totalorder %s21, 0
      %p158 = por %p156, %p157
      %p159 = scmp.ne.s32.totalorder %s145, %s146
      %p160 = scmp.eq.s32.totalorder %s22, 1
      %p161 = por %p159, %p160
      %p163 = scmp.ne.s32.totalorder %s146, %s162
      %p164 = scmp.eq.s32.totalorder %s22, 0
      %p165 = por %p163, %p164
      %s167 = sadd.s32 %s166, 1
      %p170 = scmp.eq.s32.totalorder %s16, 1
      %p171 = scmp.ne.s32.totalorder %s166, %s168
      %p172 = scmp.eq.s32.totalorder %s16, 0
      %p173 = por %p171, %p172
      %p174 = scmp.ne.s32.totalorder %s166, %s168
      %p175 = scmp.eq.s32.totalorder %s21, 1
      %p176 = por %p174, %p175
      %p177 = scmp.ne.s32.totalorder %s168, %s169
      %p178 = scmp.eq.s32.totalorder %s21, 0
      %p179 = por %p177, %p178
      %p180 = scmp.ne.s32.totalorder %s168, %s169
      %p181 = scmp.eq.s32.totalorder %s22, 1
      %p182 = por %p180, %p181
      %p184 = scmp.ne.s32.totalorder %s169, %s183
      %p185 = scmp.eq.s32.totalorder %s22, 0
      %p186 = por %p184, %p185
      %s187 = ssub.s32 %s23, %s35
      %s188 = ssub.s32 %s24, %s31
      %s189 = sor.u32 %s187, %s188
      %p190 = scmp.eq.s32.totalorder %s189, 0
      %s192 = sadd.s32 %s191, 1
      %s193 = scalar_select %p190, %s191, %s192
      %p196 = pneg %p190
      %p197 = scmp.eq.s32.totalorder %s16, 1
      %p198 = por %p196, %p197
      %p199 = scmp.ne.s32.totalorder %s191, %s194
      %p200 = scmp.eq.s32.totalorder %s16, 0
      %p201 = por %p199, %p200
      %p202 = scmp.ne.s32.totalorder %s191, %s194
      %p203 = scmp.eq.s32.totalorder %s21, 1
      %p204 = por %p202, %p203
      %p205 = scmp.ne.s32.totalorder %s194, %s195
      %p206 = scmp.eq.s32.totalorder %s21, 0
      %p207 = por %p205, %p206
      %p208 = scmp.ne.s32.totalorder %s194, %s195
      %p209 = scmp.eq.s32.totalorder %s22, 1
      %p210 = por %p208, %p209
      %p212 = scmp.ne.s32.totalorder %s195, %s211
      %p213 = scmp.eq.s32.totalorder %s22, 0
      %p214 = por %p212, %p213
      %p215 = scmp.le.s32.totalorder 1, %s16
      %p216 = scmp.lt.s32.totalorder %s16, 3
      %p217 = pnand %p215, %p216
      %p218 = pneg %p217
      // Predicated region
      $region9: #{tpu_custom_call.1} parent=5 // pred_check
        _
      $region10: #{tpu_custom_call.1} parent=5 // pred_check_branch
        %220 = sbr.rel (%p217) target = $region12
      $region11: #{tpu_custom_call.1} parent=5 // pred_region
        %s221 = ssub.s32 %s16, 1
        // Predicated region
        $region13: #{tpu_custom_call.1} parent=11 // pred_check
          %p222 = pneg %p80
        $region14: #{tpu_custom_call.1} parent=11 // pred_check_branch
          %224 = sbr.rel (%p222) target = $region16
        $region15: #{tpu_custom_call.1} parent=11 // pred_region
          %p225 = scmp.lt.s32.totalorder %s26, 0
          %s226 = scalar_select %p225, %s26, 0
          %s227 = smul.addr %s226, 8
          %s228 = scalar_lea.vmem %s1, %s227
        $region16: #{tpu_custom_call.1} parent=11 // pred_fallthru
          _
        // Predicated region
        $region17: #{tpu_custom_call.1} parent=11 // pred_check
          %p229 = pneg %p106
        $region18: #{tpu_custom_call.1} parent=11 // pred_check_branch
          %231 = sbr.rel (%p229) target = $region20
        $region19: #{tpu_custom_call.1} parent=11 // pred_region
          %p232 = scmp.lt.s32.totalorder %s26, 0
          %s233 = scalar_select %p232, %s26, 0
          %s234 = smul.addr %s233, 8
          %s235 = scalar_lea.vmem %s2, %s234
        $region20: #{tpu_custom_call.1} parent=11 // pred_fallthru
          _
        // Predicated region
        $region21: #{tpu_custom_call.1} parent=11 // pred_check
          %p236 = pneg %p132
        $region22: #{tpu_custom_call.1} parent=11 // pred_check_branch
          %238 = sbr.rel (%p236) target = $region24
        $region23: #{tpu_custom_call.1} parent=11 // pred_region
          %p239 = scmp.lt.s32.totalorder %s26, 0
          %s240 = scalar_select %p239, %s26, 0
          %s241 = smul.addr %s240, 8
          %s242 = scalar_lea.vmem %s3, %s241
        $region24: #{tpu_custom_call.1} parent=11 // pred_fallthru
          _
        // Predicated region
        $region25: #{tpu_custom_call.1} parent=11 // pred_check
          %p243 = pneg %p158
        $region26: #{tpu_custom_call.1} parent=11 // pred_check_branch
          %245 = sbr.rel (%p243) target = $region28
        $region27: #{tpu_custom_call.1} parent=11 // pred_region
          %p246 = scmp.lt.s32.totalorder %s26, 0
          %s247 = scalar_select %p246, %s26, 0
          %s248 = smul.addr %s247, 8
          %s249 = scalar_lea.vmem %s4, %s248
        $region28: #{tpu_custom_call.1} parent=11 // pred_fallthru
          _
        // Predicated region
        $region29: #{tpu_custom_call.1} parent=11 // pred_check
          %p250 = pneg %p179
        $region30: #{tpu_custom_call.1} parent=11 // pred_check_branch
          %252 = sbr.rel (%p250) target = $region32
        $region31: #{tpu_custom_call.1} parent=11 // pred_region
          %254 = vsyncadd [#allocation3], 0
          %s256 = sshll.u32 %s5, 4
          %s257 = int_to_ptr.hbm [resolvable:$true] %s256
          %s258 = sshll.u32 [#allocation2], 4
          %s259 = int_to_ptr.vmem [resolvable:$true] %s258
          %261 = dma.hbm_to_vmem [thread:$0]  %s257, 256, %s259, [#allocation3]
        $region32: #{tpu_custom_call.1} parent=11 // pred_fallthru
          _
      $region12: #{tpu_custom_call.1} parent=5 // pred_fallthru
        _
      %p262 = scmp.lt.s32.totalorder %s16, 2
      // Predicated region
      $region33: #{tpu_custom_call.1} parent=5 // pred_check
        %p263 = pneg %p262
      $region34: #{tpu_custom_call.1} parent=5 // pred_check_branch
        %265 = sbr.rel (%p263) target = $region36
      $region35: #{tpu_custom_call.1} parent=5 // pred_region
        // Predicated region
        $region37: #{tpu_custom_call.1} parent=35 // pred_check
          %p266 = pneg %p48
        $region38: #{tpu_custom_call.1} parent=35 // pred_check_branch
          %268 = sbr.rel (%p266) target = $region40
        $region39: #{tpu_custom_call.1} parent=35 // pred_region
          %p269 = scmp.lt.s32.totalorder %s23, 1
          %s270 = scalar_select %p269, %s23, 1
          %s271 = smul.addr %s270, 2
          %s272 = smul.addr %s271, 4
          %s273 = scalar_lea.vmem %s0, %s272
        $region40: #{tpu_custom_call.1} parent=35 // pred_fallthru
          _
      $region36: #{tpu_custom_call.1} parent=5 // pred_fallthru
        _
      %p274 = scmp.le.s32.totalorder 1, %s16
      %p275 = scmp.lt.s32.totalorder %s16, 3
      %p276 = pnand %p274, %p275
      %p277 = pneg %p276
      // Predicated region
      $region41: #{tpu_custom_call.1} parent=5 // pred_check
        _
      $region42: #{tpu_custom_call.1} parent=5 // pred_check_branch
        %279 = sbr.rel (%p276) target = $region44
      $region43: #{tpu_custom_call.1} parent=5 // pred_region
        %s280 = ssub.s32 %s16, 1
        // Predicated region
        $region45: #{tpu_custom_call.1} parent=43 // pred_check
          %p281 = pneg %p179
        $region46: #{tpu_custom_call.1} parent=43 // pred_check_branch
          %283 = sbr.rel (%p281) target = $region48
        $region47: #{tpu_custom_call.1} parent=43 // pred_region
          %285 = dma.done [#allocation3], 256
        $region48: #{tpu_custom_call.1} parent=43 // pred_fallthru
          _
        %p286 = scmp.lt.s32.totalorder %s25, 1
        %s287 = scalar_select %p286, %s25, 1
        %s288 = smul.addr %s287, 2
        %s289 = smul.addr %s288, 4
        %s290 = scalar_lea.vmem %s0, %s289
        %p291 = pneg %p54
        %p292 = pneg %p51
        %p293 = scmp.lt.s32.totalorder %s26, 0
        %s294 = scalar_select %p293, %s26, 0
        %s295 = smul.addr %s294, 8
        %s296 = scalar_lea.vmem %s1, %s295
        %p297 = pneg %p80
        %p298 = pneg %p77
        %p299 = scmp.lt.s32.totalorder %s26, 0
        %s300 = scalar_select %p299, %s26, 0
        %s301 = smul.addr %s300, 8
        %s302 = scalar_lea.vmem %s2, %s301
        %p303 = pneg %p106
        %p304 = pneg %p103
        %p305 = scmp.lt.s32.totalorder %s26, 0
        %s306 = scalar_select %p305, %s26, 0
        %s307 = smul.addr %s306, 8
        %s308 = scalar_lea.vmem %s3, %s307
        %p309 = pneg %p132
        %p310 = pneg %p129
        %p311 = scmp.lt.s32.totalorder %s26, 0
        %s312 = scalar_select %p311, %s26, 0
        %s313 = smul.addr %s312, 8
        %s314 = scalar_lea.vmem %s4, %s313
        %p315 = pneg %p158
        %p316 = pneg %p155
        %p317 = pneg %p179
        %p318 = pneg %p176
        %p319 = pneg %p207
        %p320 = pneg %p204
        %s321 = sand.u32 %s194, 1
        %s322 = scalar_lea.sflag [#allocation4], %s321
        %s323 = sand.u32 %s194, 1
        %s324 = smul.addr %s323, 16
        %s325 = scalar_lea.vmem [#allocation5], %s324
        %p326 = scmp.lt.s32.totalorder %s25, 1
        %s327 = scalar_select %p326, %s25, 1
        %s328 = smul.addr %s327, 2
        %s329 = smul.addr %s328, 4
        %s330 = scalar_lea.vmem %s0, %s329
        %p331 = scmp.lt.s32.totalorder %s26, 0
        %s332 = scalar_select %p331, %s26, 0
        %s333 = smul.addr %s332, 8
        %s334 = scalar_lea.vmem %s1, %s333
        %p335 = scmp.lt.s32.totalorder %s26, 0
        %s336 = scalar_select %p335, %s26, 0
        %s337 = smul.addr %s336, 8
        %s338 = scalar_lea.vmem %s2, %s337
        %p339 = scmp.lt.s32.totalorder %s26, 0
        %s340 = scalar_select %p339, %s26, 0
        %s341 = smul.addr %s340, 8
        %s342 = scalar_lea.vmem %s3, %s341
        %p343 = scmp.lt.s32.totalorder %s26, 0
        %s344 = scalar_select %p343, %s26, 0
        %s345 = smul.addr %s344, 8
        %s346 = scalar_lea.vmem %s4, %s345
        %v347 = vld [vmem:[%s338] sm:$0xff]
        %v348 = vld [vmem:[%s342] sm:$0xff]
        %v349 = vld [vmem:[%s346] sm:$0xff]
        %v350 = vld [vmem:[%s330] sm:$0xff]
        %v351 = vld [vmem:[%s334] sm:$0xff]
        %353 = vset.pattern.permute.xlu0 0
        %354 = vperm.xlu0 %353, %v351
        %v355 = vpop.permute.xlu0 %354
        %v358 = vperm.slane %v350, 0
        %v359 = vperm.slane %v350, 4
        %v362 = vperm.slane %v358, 0
        %v363 = vperm.slane %v359, 0
        %v364 = vmul.f32 %v355, %v362
        %v365 = vmul.f32 %v355, %v363
        %367 = vset.pattern.permute.xlu0 0
        %368 = vperm.xlu0 %367, %v347
        %v369 = vpop.permute.xlu0 %368
        %v371 = vadd.f32 %v364, %v369
        %v372 = vadd.f32 %v365, %v369
        %373 = vset.pattern.permute.xlu0 1
        %374 = vperm.xlu0 %373, %v351
        %v375 = vpop.permute.xlu0 %374
        %v377 = vperm.slane %v350, 1
        %v378 = vperm.slane %v350, 5
        %v381 = vperm.slane %v377, 1
        %v382 = vperm.slane %v378, 1
        %v383 = vmul.f32 %v375, %v381
        %v384 = vmul.f32 %v375, %v382
        %v385 = vadd.f32 %v371, %v383
        %v386 = vadd.f32 %v372, %v384
        %387 = vset.pattern.permute.xlu0 2
        %388 = vperm.xlu0 %387, %v351
        %v389 = vpop.permute.xlu0 %388
        %v391 = vperm.slane %v350, 2
        %v392 = vperm.slane %v350, 6
        %v395 = vperm.slane %v391, 2
        %v396 = vperm.slane %v392, 2
        %v397 = vmul.f32 %v389, %v395
        %v398 = vmul.f32 %v389, %v396
        %v399 = vadd.f32 %v385, %v397
        %v400 = vadd.f32 %v386, %v398
        %401 = vset.pattern.permute.xlu0 3
        %402 = vperm.xlu0 %401, %v351
        %v403 = vpop.permute.xlu0 %402
        %v405 = vperm.slane %v350, 3
        %v406 = vperm.slane %v350, 7
        %v409 = vperm.slane %v405, 3
        %v410 = vperm.slane %v406, 3
        %v411 = vmul.f32 %v403, %v409
        %v412 = vmul.f32 %v403, %v410
        %v413 = vadd.f32 %v399, %v411
        %v414 = vadd.f32 %v400, %v412
        %416 = vset.pattern.permute.xlu0 4
        %417 = vperm.xlu0 %416, %v348
        %v418 = vpop.permute.xlu0 %417
        %v420 = vmul.f32 %v418, %v413
        %v421 = vmul.f32 %v418, %v414
        %423 = vset.pattern.permute.xlu0 0
        %424 = vperm.xlu0 %423, %v349
        %v425 = vpop.permute.xlu0 %424
        %v427 = vadd.f32 %v420, %v425
        %v428 = vadd.f32 %v421, %v425
        %429 = vrot.lane.b32.xlu0 %v413, 17
        %v430 = vpop.permute.xlu0 %429
        %431 = vrot.lane.b32.xlu0 %v414, 17
        %v432 = vpop.permute.xlu0 %431
        %v433 = vlaneseq
        %v434 = vand.u32 %v433, 127
        %vm435 = vcmp.lt.s32.totalorder %v434, 17
        %v436 = vsel %vm435, %v430, %v432
        %v437 = vsel %vm435, %v432, %v430
        %v438 = vld [vmem:[#allocation2] ss:$8 sm:$0x3]
        %v440 = vperm.slane %v438, 0
        %v441 = vperm.slane %v438, 1
        %v444 = vmul.f32 %v437, %v440
        %v445 = vmul.f32 %v436, %v441
        %446 = vset.pattern.permute.xlu0 0
        %447 = vperm.xlu0 %446, %v348
        %v448 = vpop.permute.xlu0 %447
        %v450 = vmul.f32 %v448, %v444
        %v451 = vmul.f32 %v448, %v445
        %v452 = vadd.f32 %v427, %v450
        %v453 = vadd.f32 %v428, %v451
        %454 = vrot.lane.b32.xlu0 %v413, 16
        %v455 = vpop.permute.xlu0 %454
        %456 = vrot.lane.b32.xlu0 %v414, 16
        %v457 = vpop.permute.xlu0 %456
        %vm458 = vcmp.lt.s32.totalorder %v434, 16
        %v459 = vsel %vm458, %v455, %v457
        %v460 = vsel %vm458, %v457, %v455
        %s461 = scalar_lea.vmem [#allocation2], 1
        %v462 = vld [vmem:[%s461] ss:$8 sm:$0x3]
        %v464 = vperm.slane %v462, 0
        %v465 = vperm.slane %v462, 1
        %v468 = vmul.f32 %v460, %v464
        %v469 = vmul.f32 %v459, %v465
        %470 = vset.pattern.permute.xlu0 1
        %471 = vperm.xlu0 %470, %v348
        %v472 = vpop.permute.xlu0 %471
        %v474 = vmul.f32 %v472, %v468
        %v475 = vmul.f32 %v472, %v469
        %v476 = vadd.f32 %v452, %v474
        %v477 = vadd.f32 %v453, %v475
        %478 = vrot.lane.b32.xlu0 %v413, 15
        %v479 = vpop.permute.xlu0 %478
        %480 = vrot.lane.b32.xlu0 %v414, 15
        %v481 = vpop.permute.xlu0 %480
        %vm482 = vcmp.lt.s32.totalorder %v434, 15
        %v483 = vsel %vm482, %v479, %v481
        %v484 = vsel %vm482, %v481, %v479
        %s485 = scalar_lea.vmem [#allocation2], 2
        %v486 = vld [vmem:[%s485] ss:$8 sm:$0x3]
        %v488 = vperm.slane %v486, 0
        %v489 = vperm.slane %v486, 1
        %v492 = vmul.f32 %v484, %v488
        %v493 = vmul.f32 %v483, %v489
        %494 = vset.pattern.permute.xlu0 2
        %495 = vperm.xlu0 %494, %v348
        %v496 = vpop.permute.xlu0 %495
        %v498 = vmul.f32 %v496, %v492
        %v499 = vmul.f32 %v496, %v493
        %v500 = vadd.f32 %v476, %v498
        %v501 = vadd.f32 %v477, %v499
        %502 = vrot.lane.b32.xlu0 %v413, 1
        %v503 = vpop.permute.xlu0 %502
        %504 = vrot.lane.b32.xlu0 %v414, 1
        %v505 = vpop.permute.xlu0 %504
        %vm506 = vcmp.lt.s32.totalorder %v434, 1
        %v507 = vsel %vm506, %v503, %v505
        %v508 = vsel %vm506, %v505, %v503
        %s509 = scalar_lea.vmem [#allocation2], 3
        %v510 = vld [vmem:[%s509] ss:$8 sm:$0x3]
        %v512 = vperm.slane %v510, 0
        %v513 = vperm.slane %v510, 1
        %v516 = vmul.f32 %v508, %v512
        %v517 = vmul.f32 %v507, %v513
        %518 = vset.pattern.permute.xlu0 3
        %519 = vperm.xlu0 %518, %v348
        %v520 = vpop.permute.xlu0 %519
        %v522 = vmul.f32 %v520, %v516
        %v523 = vmul.f32 %v520, %v517
        %v524 = vadd.f32 %v500, %v522
        %v525 = vadd.f32 %v501, %v523
        %526 = vrot.lane.b32.xlu0 %v413, 127
        %v527 = vpop.permute.xlu0 %526
        %528 = vrot.lane.b32.xlu0 %v414, 127
        %v529 = vpop.permute.xlu0 %528
        %vm530 = vcmp.lt.s32.totalorder %v434, 127
        %v531 = vsel %vm530, %v527, %v529
        %v532 = vsel %vm530, %v529, %v527
        %s533 = scalar_lea.vmem [#allocation2], 4
        %v534 = vld [vmem:[%s533] ss:$8 sm:$0x3]
        %v536 = vperm.slane %v534, 0
        %v537 = vperm.slane %v534, 1
        %v540 = vmul.f32 %v531, %v536
        %v541 = vmul.f32 %v532, %v537
        %542 = vset.pattern.permute.xlu0 5
        %543 = vperm.xlu0 %542, %v348
        %v544 = vpop.permute.xlu0 %543
        %v546 = vmul.f32 %v544, %v540
        %v547 = vmul.f32 %v544, %v541
        %v548 = vadd.f32 %v524, %v546
        %v549 = vadd.f32 %v525, %v547
        %550 = vrot.lane.b32.xlu0 %v413, 113
        %v551 = vpop.permute.xlu0 %550
        %552 = vrot.lane.b32.xlu0 %v414, 113
        %v553 = vpop.permute.xlu0 %552
        %vm554 = vcmp.lt.s32.totalorder %v434, 113
        %v555 = vsel %vm554, %v551, %v553
        %v556 = vsel %vm554, %v553, %v551
        %s557 = scalar_lea.vmem [#allocation2], 5
        %v558 = vld [vmem:[%s557] ss:$8 sm:$0x3]
        %v560 = vperm.slane %v558, 0
        %v561 = vperm.slane %v558, 1
        %v564 = vmul.f32 %v555, %v560
        %v565 = vmul.f32 %v556, %v561
        %566 = vset.pattern.permute.xlu0 6
        %567 = vperm.xlu0 %566, %v348
        %v568 = vpop.permute.xlu0 %567
        %v570 = vmul.f32 %v568, %v564
        %v571 = vmul.f32 %v568, %v565
        %v572 = vadd.f32 %v548, %v570
        %v573 = vadd.f32 %v549, %v571
        %574 = vrot.lane.b32.xlu0 %v413, 112
        %v575 = vpop.permute.xlu0 %574
        %576 = vrot.lane.b32.xlu0 %v414, 112
        %v577 = vpop.permute.xlu0 %576
        %vm578 = vcmp.lt.s32.totalorder %v434, 112
        %v579 = vsel %vm578, %v575, %v577
        %v580 = vsel %vm578, %v577, %v575
        %s581 = scalar_lea.vmem [#allocation2], 6
        %v582 = vld [vmem:[%s581] ss:$8 sm:$0x3]
        %v584 = vperm.slane %v582, 0
        %v585 = vperm.slane %v582, 1
        %v588 = vmul.f32 %v579, %v584
        %v589 = vmul.f32 %v580, %v585
        %590 = vset.pattern.permute.xlu0 7
        %591 = vperm.xlu0 %590, %v348
        %v592 = vpop.permute.xlu0 %591
        %v594 = vmul.f32 %v592, %v588
        %v595 = vmul.f32 %v592, %v589
        %v596 = vadd.f32 %v572, %v594
        %v597 = vadd.f32 %v573, %v595
        %598 = vrot.lane.b32.xlu0 %v413, 111
        %v599 = vpop.permute.xlu0 %598
        %600 = vrot.lane.b32.xlu0 %v414, 111
        %v601 = vpop.permute.xlu0 %600
        %vm602 = vcmp.lt.s32.totalorder %v434, 111
        %v603 = vsel %vm602, %v599, %v601
        %v604 = vsel %vm602, %v601, %v599
        %s605 = scalar_lea.vmem [#allocation2], 7
        %v606 = vld [vmem:[%s605] ss:$8 sm:$0x3]
        %v608 = vperm.slane %v606, 0
        %v609 = vperm.slane %v606, 1
        %v612 = vmul.f32 %v603, %v608
        %v613 = vmul.f32 %v604, %v609
        %614 = vset.pattern.permute.xlu0 8
        %615 = vperm.xlu0 %614, %v348
        %v616 = vpop.permute.xlu0 %615
        %v618 = vmul.f32 %v616, %v612
        %v619 = vmul.f32 %v616, %v613
        %v620 = vadd.f32 %v596, %v618
        %v621 = vadd.f32 %v597, %v619
        %622 = vst [vmem:[%s325] sm:$0xff] %v620
        %623 = vst [vmem:[%s325 + $0x8] sm:$0xff] %v621
        %s624 = sand.u32 %s194, 1
        %s625 = scalar_lea.sflag [#allocation4], %s624
        %s626 = sand.u32 %s194, 1
        %s627 = smul.addr %s626, 16
        %s628 = scalar_lea.vmem [#allocation5], %s627
        // Predicated region
        $region49: #{tpu_custom_call.1} parent=43 // pred_check
          %p629 = pneg %p204
        $region50: #{tpu_custom_call.1} parent=43 // pred_check_branch
          %631 = sbr.rel (%p629) target = $region52
        $region51: #{tpu_custom_call.1} parent=43 // pred_region
          %633 = vsyncadd %s625, 0
          %s634 = smul.addr %s26, 2
          %s635 = smul.addr %s25, 2
          %s636 = sadd.s32 %s634, %s635
          %s637 = smul.addr %s636, 8
          %s638 = scalar_lea.hbm %s6, %s637
          %s640 = sshll.u32 %s628, 4
          %s641 = int_to_ptr.vmem [resolvable:$true] %s640
          %s642 = sshll.u32 %s638, 4
          %s643 = int_to_ptr.hbm [resolvable:$true] %s642
          %645 = dma.vmem_to_hbm [thread:$0]  %s641, 256, %s643, %s625
        $region52: #{tpu_custom_call.1} parent=43 // pred_fallthru
          _
      $region44: #{tpu_custom_call.1} parent=5 // pred_fallthru
        _
      %p646 = scmp.le.s32.totalorder 2, %s16
      // Predicated region
      $region53: #{tpu_custom_call.1} parent=5 // pred_check
        %p647 = pneg %p646
      $region54: #{tpu_custom_call.1} parent=5 // pred_check_branch
        %649 = sbr.rel (%p647) target = $region56
      $region55: #{tpu_custom_call.1} parent=5 // pred_region
        %s650 = ssub.s32 %s16, 2
        // Predicated region
        $region57: #{tpu_custom_call.1} parent=55 // pred_check
          %p651 = pneg %p210
        $region58: #{tpu_custom_call.1} parent=55 // pred_check_branch
          %653 = sbr.rel (%p651) target = $region60
        $region59: #{tpu_custom_call.1} parent=55 // pred_region
          %s654 = sand.u32 %s195, 1
          %s655 = scalar_lea.sflag [#allocation4], %s654
          %s656 = sand.u32 %s195, 1
          %s657 = smul.addr %s656, 16
          %s658 = scalar_lea.vmem [#allocation5], %s657
          %660 = dma.done %s655, 256
        $region60: #{tpu_custom_call.1} parent=55 // pred_fallthru
          _
      $region56: #{tpu_custom_call.1} parent=5 // pred_fallthru
        _
    $region6: #{tpu_custom_call.1} parent=1 // loop_footer
      %s20 = sadd.s32 1, %s16
    $region7: #{tpu_custom_call.1} parent=1 // loop_footer_branch
      %15 = sbr.rel target = $region3
    $region8: #{tpu_custom_call.1} parent=1 // loop_exit
      _
    %661 = vsyncpa [#allocation3], 1
    %s662 = scalar_lea.sflag [#allocation3], 1
    %663 = vsyncpa %s662, 1
    %664 = vsyncpa [#allocation4], 1
    %s665 = scalar_lea.sflag [#allocation4], 1
    %666 = vsyncpa %s665, 1

</llo_original>
